<compile_context>
chip_gen: v7x
topology: tpu7x:2x2x1
jax: 0.10.0
libtpu: 0.0.40
codegen_flags: <defaults>
</compile_context>

<pallas_src>
import functools

import jax
import jax.numpy as jnp
from jax.experimental import pallas as pl
from jax.experimental.pallas import tpu as pltpu


def _round_up(n: int, m: int) -> int:
    return ((n + m - 1) // m) * m


def a2c_kernel(x_ref,
               w1_ref, b1_ref,      # body   Linear(input_dim -> hidden) + ReLU
               w2_ref, b2_ref,      # policy Linear(hidden -> hidden) + ReLU
               w3p_ref,             # policy Linear(hidden -> N_pad), zero-padded cols
               wv_ref,              # value  head as a (1, hidden) row (VPU reduce)
               bh_ref,              # fused head bias (1, N_pad): b3 padded + bv shifted
               out_ref,             # fused lane-dense output slab (block_b, N_pad)
               *, value_col: int):
    x = x_ref[...]
    # body: Linear + ReLU  (f32 accumulation regardless of input dtype)
    h = jnp.dot(x, w1_ref[...], preferred_element_type=jnp.float32) + b1_ref[...]
    h = jnp.maximum(h, 0.0)
    # policy hidden: Linear + ReLU
    p = jnp.dot(h.astype(w2_ref.dtype), w2_ref[...],
                preferred_element_type=jnp.float32) + b2_ref[...]
    p = jnp.maximum(p, 0.0)
    # policy logits (lane-dense padded to N_pad) + fused head bias
    out = jnp.dot(p.astype(w3p_ref.dtype), w3p_ref[...],
                  preferred_element_type=jnp.float32) + bh_ref[...]
    # value head on the VPU/XLU: (block_b, H) * (1, H) -> reduce over H -> (block_b, 1)
    val = jnp.sum(h * wv_ref[...], axis=-1, keepdims=True)
    col = jax.lax.broadcasted_iota(jnp.int32, out.shape, 1)
    out = out + jnp.where(col == value_col, val, 0.0)
    out_ref[...] = out.astype(out_ref.dtype)


def prepare_params(params, dtype=jnp.float32):
    """One-time param prep: pad/fuse head weights, cast matrices (biases stay f32)."""
    w1, b1, w2, b2, w3, b3, wv, bv = params
    input_dim, hidden = w1.shape
    output_dim = w3.shape[1]
    n_pad = _round_up(output_dim + 1, 128)  # policy cols [0, output_dim), value at output_dim

    w3_p = jnp.pad(w3, ((0, 0), (0, n_pad - output_dim))).astype(dtype)
    bh = (jnp.pad(b3, ((0, 0), (0, n_pad - output_dim)))
          + jnp.pad(bv, ((0, 0), (output_dim, n_pad - output_dim - 1)))).astype(jnp.float32)
    wv_row = wv.reshape(1, hidden).astype(jnp.float32)

    return dict(
        w1=w1.astype(dtype), b1=b1.astype(jnp.float32),
        w2=w2.astype(dtype), b2=b2.astype(jnp.float32),
        w3p=w3_p, wv=wv_row, bh=bh,
        input_dim=input_dim, hidden=hidden, output_dim=output_dim,
        n_pad=n_pad, dtype=dtype,
    )


def a2c_forward(x, prepped, *, block_b=None, out_dtype=None):
    """Full A2CNet forward in one Pallas kernel. Returns (policy_logits, value)."""
    B, input_dim = x.shape
    assert input_dim == prepped["input_dim"]
    hidden = prepped["hidden"]
    output_dim = prepped["output_dim"]
    n_pad = prepped["n_pad"]
    dtype = prepped["dtype"]
    if out_dtype is None:
        out_dtype = x.dtype

    x = x.astype(dtype)

    # Batch tiling: one grid step for small/medium B; 1024-row tiles for large B so
    # the grid has >=2 "parallel" steps (both v7x TensorCores get work).
    if block_b is None:
        block_b = B if B <= 1024 else 1024
    b_pad = _round_up(B, block_b)
    if b_pad != B:
        x = jnp.pad(x, ((0, b_pad - B), (0, 0)))
    grid = (b_pad // block_b,)

    def rep(shape):  # replicated (grid-constant) weight / bias block
        return pl.BlockSpec(shape, lambda i: (0, 0))

    w_bytes = jnp.dtype(dtype).itemsize
    flops = 2 * b_pad * (input_dim * hidden + hidden * hidden + hidden * n_pad + hidden)
    bytes_accessed = (b_pad * input_dim * w_bytes
                      + (input_dim * hidden + hidden * hidden + hidden * n_pad) * w_bytes
                      + (3 * hidden + n_pad) * 4
                      + b_pad * n_pad * jnp.dtype(out_dtype).itemsize)
    cost = pl.CostEstimate(flops=flops, transcendentals=0, bytes_accessed=bytes_accessed)

    kernel = functools.partial(a2c_kernel, value_col=output_dim)

    slab = pl.pallas_call(
        kernel,
        out_shape=jax.ShapeDtypeStruct((b_pad, n_pad), out_dtype),
        grid_spec=pltpu.PrefetchScalarGridSpec(
            num_scalar_prefetch=0,
            grid=grid,
            in_specs=[
                pl.BlockSpec((block_b, input_dim), lambda i: (i, 0)),  # x, no K pad
                rep((input_dim, hidden)), rep((1, hidden)),            # w1, b1
                rep((hidden, hidden)), rep((1, hidden)),               # w2, b2
                rep((hidden, n_pad)),                                  # w3 (padded)
                rep((1, hidden)),                                      # wv row
                rep((1, n_pad)),                                       # fused head bias
            ],
            out_specs=pl.BlockSpec((block_b, n_pad), lambda i: (i, 0)),
        ),
        compiler_params=pltpu.CompilerParams(
            dimension_semantics=("parallel",)),
        cost_estimate=cost,
    )(x, prepped["w1"], prepped["b1"], prepped["w2"], prepped["b2"],
      prepped["w3p"], prepped["wv"], prepped["bh"])

    pol = slab[:B, :output_dim]
    val = slab[:B, output_dim:output_dim + 1]
    return pol, val


def xavier_uniform(key, shape, gain=1.0):
    fan_in, fan_out = shape
    limit = gain * jnp.sqrt(6.0 / (fan_in + fan_out))
    return jax.random.uniform(key, shape, jnp.float32, -limit, limit)


def init_params(key, input_dim, output_dim, hidden_dim):
    ks = jax.random.split(key, 8)
    w1 = xavier_uniform(ks[0], (input_dim, hidden_dim))
    b1 = jax.random.uniform(ks[1], (1, hidden_dim), jnp.float32, -0.05, 0.05)
    w2 = xavier_uniform(ks[2], (hidden_dim, hidden_dim))
    b2 = jax.random.uniform(ks[3], (1, hidden_dim), jnp.float32, -0.05, 0.05)
    # final policy layer mimics nn.init.xavier_uniform_(gain=0.01)
    w3 = xavier_uniform(ks[4], (hidden_dim, output_dim), gain=0.01)
    b3 = jax.random.uniform(ks[5], (1, output_dim), jnp.float32, -0.05, 0.05)
    wv = xavier_uniform(ks[6], (hidden_dim, 1))
    bv = jax.random.uniform(ks[7], (1, 1), jnp.float32, -0.05, 0.05)
    return (w1, b1, w2, b2, w3, b3, wv, bv)


def reference_forward(x, params):
    w1, b1, w2, b2, w3, b3, wv, bv = params
    h = jnp.maximum(x @ w1 + b1, 0.0)
    p = jnp.maximum(h @ w2 + b2, 0.0)
    return p @ w3 + b3, h @ wv + bv


if __name__ == "__main__":
    B, input_dim, output_dim, hidden_dim = 16, 32, 8, 128

    key = jax.random.PRNGKey(0)
    k_x, k_p = jax.random.split(key)
    x = jax.random.normal(k_x, (B, input_dim), jnp.float32)
    params = init_params(k_p, input_dim, output_dim, hidden_dim)

    # One-time param prep (padding / head fusion hoisted out of the forward path).
    prepped = prepare_params(params, dtype=jnp.float32)
    # TODO(synk): on v6e/v7x, prepare_params(dtype=jnp.bfloat16) halves weight/x/slab
    # HBM streams (validate at ~1e-2 tolerance); on v5e keep activations f32.

    pol, val = a2c_forward(x, prepped)          # block_b defaults to B -> grid=(1,)
    pol = jax.block_until_ready(pol)
    val = jax.block_until_ready(val)

    pol_ref, val_ref = reference_forward(x, params)
    assert pol.shape == (B, output_dim) and val.shape == (B, 1)
    assert jnp.allclose(pol, pol_ref, atol=1e-5, rtol=1e-5)
    assert jnp.allclose(val, val_ref, atol=1e-5, rtol=1e-5)

    print("KERNEL_OK")
</pallas_src>

<mosaic_0001>
module attributes {stable_mosaic.version = 11 : i64} {
  func.func @a2c_kernel(%arg0: i32, %arg1: memref<16x32xf32, #tpu.memory_space<vmem>>, %arg2: memref<32x128xf32, #tpu.memory_space<vmem>>, %arg3: memref<1x128xf32, #tpu.memory_space<vmem>>, %arg4: memref<128x128xf32, #tpu.memory_space<vmem>>, %arg5: memref<1x128xf32, #tpu.memory_space<vmem>>, %arg6: memref<128x128xf32, #tpu.memory_space<vmem>>, %arg7: memref<1x128xf32, #tpu.memory_space<vmem>>, %arg8: memref<1x128xf32, #tpu.memory_space<vmem>>, %arg9: memref<16x128xf32, #tpu.memory_space<vmem>>) attributes {dimension_semantics = [#tpu.dimension_semantics<parallel>], iteration_bounds = array<i64: 1>, scalar_prefetch = 0 : i64, scratch_operands = 0 : i64, tpu.core_type = #tpu.core_type<tc>, window_params = [{transform_indices = @transform_0, window_bounds = array<i64: 16, 32>}, {pipeline_mode = #tpu.pipeline_mode<synchronous>, transform_indices = @transform_1, window_bounds = array<i64: 32, 128>}, {pipeline_mode = #tpu.pipeline_mode<synchronous>, transform_indices = @transform_2, window_bounds = array<i64: 1, 128>}, {pipeline_mode = #tpu.pipeline_mode<synchronous>, transform_indices = @transform_3, window_bounds = array<i64: 128, 128>}, {pipeline_mode = #tpu.pipeline_mode<synchronous>, transform_indices = @transform_4, window_bounds = array<i64: 1, 128>}, {pipeline_mode = #tpu.pipeline_mode<synchronous>, transform_indices = @transform_5, window_bounds = array<i64: 128, 128>}, {pipeline_mode = #tpu.pipeline_mode<synchronous>, transform_indices = @transform_6, window_bounds = array<i64: 1, 128>}, {pipeline_mode = #tpu.pipeline_mode<synchronous>, transform_indices = @transform_7, window_bounds = array<i64: 1, 128>}, {transform_indices = @transform_8, window_bounds = array<i64: 16, 128>}]} {
    %c0 = arith.constant 0 : index
    %c0_0 = arith.constant 0 : index
    %0 = vector.load %arg1[%c0, %c0_0] : memref<16x32xf32, #tpu.memory_space<vmem>>, vector<16x32xf32>
    %c0_1 = arith.constant 0 : index
    %c0_2 = arith.constant 0 : index
    %1 = vector.load %arg2[%c0_1, %c0_2] : memref<32x128xf32, #tpu.memory_space<vmem>>, vector<32x128xf32>
    %cst = arith.constant dense<0.000000e+00> : vector<16x128xf32>
    %2 = tpu.matmul %0, %1, %cst {dimension_numbers = #tpu.dot_dimension_numbers<[1], [0], [0], [1], [0, 0, 1, 1], [], []>} : vector<16x32xf32>, vector<32x128xf32>, vector<16x128xf32> -> vector<16x128xf32>
    %c0_3 = arith.constant 0 : index
    %c0_4 = arith.constant 0 : index
    %3 = vector.load %arg3[%c0_3, %c0_4] : memref<1x128xf32, #tpu.memory_space<vmem>>, vector<1x128xf32>
    %4 = vector.broadcast %3 : vector<1x128xf32> to vector<16x128xf32>
    %5 = arith.addf %2, %4 : vector<16x128xf32>
    %cst_5 = arith.constant 0.000000e+00 : f32
    %6 = vector.broadcast %cst_5 : f32 to vector<16x128xf32>
    %7 = arith.maximumf %5, %6 : vector<16x128xf32>
    %c0_6 = arith.constant 0 : index
    %c0_7 = arith.constant 0 : index
    %8 = vector.load %arg4[%c0_6, %c0_7] : memref<128x128xf32, #tpu.memory_space<vmem>>, vector<128x128xf32>
    %cst_8 = arith.constant dense<0.000000e+00> : vector<16x128xf32>
    %9 = tpu.matmul %7, %8, %cst_8 {dimension_numbers = #tpu.dot_dimension_numbers<[1], [0], [0], [1], [0, 0, 1, 1], [], []>} : vector<16x128xf32>, vector<128x128xf32>, vector<16x128xf32> -> vector<16x128xf32>
    %c0_9 = arith.constant 0 : index
    %c0_10 = arith.constant 0 : index
    %10 = vector.load %arg5[%c0_9, %c0_10] : memref<1x128xf32, #tpu.memory_space<vmem>>, vector<1x128xf32>
    %11 = vector.broadcast %10 : vector<1x128xf32> to vector<16x128xf32>
    %12 = arith.addf %9, %11 : vector<16x128xf32>
    %cst_11 = arith.constant 0.000000e+00 : f32
    %13 = vector.broadcast %cst_11 : f32 to vector<16x128xf32>
    %14 = arith.maximumf %12, %13 : vector<16x128xf32>
    %c0_12 = arith.constant 0 : index
    %c0_13 = arith.constant 0 : index
    %15 = vector.load %arg6[%c0_12, %c0_13] : memref<128x128xf32, #tpu.memory_space<vmem>>, vector<128x128xf32>
    %cst_14 = arith.constant dense<0.000000e+00> : vector<16x128xf32>
    %16 = tpu.matmul %14, %15, %cst_14 {dimension_numbers = #tpu.dot_dimension_numbers<[1], [0], [0], [1], [0, 0, 1, 1], [], []>} : vector<16x128xf32>, vector<128x128xf32>, vector<16x128xf32> -> vector<16x128xf32>
    %c0_15 = arith.constant 0 : index
    %c0_16 = arith.constant 0 : index
    %17 = vector.load %arg8[%c0_15, %c0_16] : memref<1x128xf32, #tpu.memory_space<vmem>>, vector<1x128xf32>
    %18 = vector.broadcast %17 : vector<1x128xf32> to vector<16x128xf32>
    %19 = arith.addf %16, %18 : vector<16x128xf32>
    %c0_17 = arith.constant 0 : index
    %c0_18 = arith.constant 0 : index
    %20 = vector.load %arg7[%c0_17, %c0_18] : memref<1x128xf32, #tpu.memory_space<vmem>>, vector<1x128xf32>
    %21 = vector.broadcast %20 : vector<1x128xf32> to vector<16x128xf32>
    %22 = arith.mulf %7, %21 : vector<16x128xf32>
    %cst_19 = arith.constant dense<0.000000e+00> : vector<16xf32>
    %23 = vector.multi_reduction <add>, %22, %cst_19 [1] : vector<16x128xf32> to vector<16xf32>
    %24 = vector.shape_cast %23 : vector<16xf32> to vector<16x1xf32>
    %25 = tpu.iota {dimensions = array<i32: 1>} : vector<16x128xi32>
    %c8_i32 = arith.constant 8 : i32
    %26 = vector.broadcast %c8_i32 : i32 to vector<16x128xi32>
    %27 = arith.cmpi eq, %25, %26 : vector<16x128xi32>
    %cst_20 = arith.constant 0.000000e+00 : f32
    %28 = vector.shape_cast %24 : vector<16x1xf32> to vector<16x1xf32>
    %29 = vector.broadcast %28 : vector<16x1xf32> to vector<16x128xf32>
    %30 = vector.broadcast %cst_20 : f32 to vector<16x128xf32>
    %31 = arith.select %27, %29, %30 : vector<16x128xi1>, vector<16x128xf32>
    %32 = arith.addf %19, %31 : vector<16x128xf32>
    %c0_21 = arith.constant 0 : index
    %c0_22 = arith.constant 0 : index
    %33 = vector.load %arg9[%c0_21, %c0_22] : memref<16x128xf32, #tpu.memory_space<vmem>>, vector<16x128xf32>
    tpu.vector_store %arg9[%c0_21, %c0_22], %32 {strides = array<i32>} : memref<16x128xf32, #tpu.memory_space<vmem>>, vector<16x128xf32>,
    return
  }
  func.func @transform_0(%arg0: i32) -> (i32, i32) {
    %c0_i32 = arith.constant 0 : i32
    %c0_i32_0 = arith.constant 0 : i32
    return %arg0, %c0_i32 : i32, i32
  }
  func.func @transform_1(%arg0: i32) -> (i32, i32) {
    %c0_i32 = arith.constant 0 : i32
    %c0_i32_0 = arith.constant 0 : i32
    %c0_i32_1 = arith.constant 0 : i32
    return %c0_i32, %c0_i32_0 : i32, i32
  }
  func.func @transform_2(%arg0: i32) -> (i32, i32) {
    %c0_i32 = arith.constant 0 : i32
    %c0_i32_0 = arith.constant 0 : i32
    %c0_i32_1 = arith.constant 0 : i32
    return %c0_i32, %c0_i32_0 : i32, i32
  }
  func.func @transform_3(%arg0: i32) -> (i32, i32) {
    %c0_i32 = arith.constant 0 : i32
    %c0_i32_0 = arith.constant 0 : i32
    %c0_i32_1 = arith.constant 0 : i32
    return %c0_i32, %c0_i32_0 : i32, i32
  }
  func.func @transform_4(%arg0: i32) -> (i32, i32) {
    %c0_i32 = arith.constant 0 : i32
    %c0_i32_0 = arith.constant 0 : i32
    %c0_i32_1 = arith.constant 0 : i32
    return %c0_i32, %c0_i32_0 : i32, i32
  }
  func.func @transform_5(%arg0: i32) -> (i32, i32) {
    %c0_i32 = arith.constant 0 : i32
    %c0_i32_0 = arith.constant 0 : i32
    %c0_i32_1 = arith.constant 0 : i32
    return %c0_i32, %c0_i32_0 : i32, i32
  }
  func.func @transform_6(%arg0: i32) -> (i32, i32) {
    %c0_i32 = arith.constant 0 : i32
    %c0_i32_0 = arith.constant 0 : i32
    %c0_i32_1 = arith.constant 0 : i32
    return %c0_i32, %c0_i32_0 : i32, i32
  }
  func.func @transform_7(%arg0: i32) -> (i32, i32) {
    %c0_i32 = arith.constant 0 : i32
    %c0_i32_0 = arith.constant 0 : i32
    %c0_i32_1 = arith.constant 0 : i32
    return %c0_i32, %c0_i32_0 : i32, i32
  }
  func.func @transform_8(%arg0: i32) -> (i32, i32) {
    %c0_i32 = arith.constant 0 : i32
    %c0_i32_0 = arith.constant 0 : i32
    return %arg0, %c0_i32 : i32, i32
  }
}

</mosaic_0001>

<llo_original>
// kernel: tpu_custom_call.1
$region0: #{tpu_custom_call.1}
  #allocation0 [shape = 'u32[]', space=smem, size = 0x4, offset = 0x4, fixed_abs, tag = 'smem constant byte address 0x4 - core index']
  #allocation1 [shape = 'u32[144,128]{1,0:T(1,128)}', space=vmem, size = 0x12000, scoped, tag = 'internal scratch']
  %s0 = inlined_call_operand.hbm [shape: f32[16,32], index: 0, kind: input, shape index: {}]
  %s1 = inlined_call_operand.hbm [shape: f32[32,128], index: 1, kind: input, shape index: {}]
  %s2 = inlined_call_operand.vmem [shape: f32[1,128], index: 2, kind: input, shape index: {}]
  %s3 = inlined_call_operand.hbm [shape: f32[128,128], index: 3, kind: input, shape index: {}]
  %s4 = inlined_call_operand.vmem [shape: f32[1,128], index: 4, kind: input, shape index: {}]
  %s5 = inlined_call_operand.hbm [shape: f32[128,128], index: 5, kind: input, shape index: {}]
  %s6 = inlined_call_operand.vmem [shape: f32[1,128], index: 6, kind: input, shape index: {}]
  %s7 = inlined_call_operand.vmem [shape: f32[1,128], index: 7, kind: input, shape index: {}]
  %s8 = inlined_call_operand.hbm [shape: f32[16,128], index: 8, kind: output, shape index: {}]
  %s9 = sld [smem:[#allocation0]]
  $region58: #{tpu_custom_call.1} parent=0
    _
  %s11 = ssub.s32 1, %s9
  %s12 = scalar_select 0, %s11, %s9
  $region1: #{tpu_custom_call.1} parent=0
    #allocation2 [shape = 'u8[8192]{0}', space=vmem, size = 0x2000, scoped, tag = 'input window, operand 0, single buffered']
    #allocation3 [shape = 's32[1]{0}', space=sflag, size = 0x4, scoped, tag = 'scoped memory for tpu_custom_call.1']
    #allocation4 [shape = 's32[1]{0}', space=sflag, size = 0x4, scoped, tag = 'scoped memory for tpu_custom_call.1']
    #allocation5 [shape = 'u8[16384]{0}', space=vmem, size = 0x4000, scoped, tag = 'input window, operand 1, single buffered']
    #allocation6 [shape = 's32[1]{0}', space=sflag, size = 0x4, scoped, tag = 'scoped memory for tpu_custom_call.1']
    #allocation7 [shape = 'u8[65536]{0}', space=vmem, size = 0x10000, scoped, tag = 'input window, operand 3, single buffered']
    #allocation8 [shape = 'u8[65536]{0}', space=vmem, size = 0x10000, scoped, tag = 'input window, operand 5, single buffered']
    #allocation9 [shape = 's32[1]{0}', space=sflag, size = 0x4, scoped, tag = 'scoped memory for tpu_custom_call.1']
    #allocation10 [shape = 'u8[8192]{0}', space=vmem, size = 0x2000, scoped, tag = 'output window, operand 0, single buffered']
    %13 = vsyncpa [#allocation3], 0
    %14 = vsyncpa [#allocation6], 0
    %15 = vsyncpa [#allocation9], 0
    %16 = vsyncpa [#allocation4], 0
    // Predicated region
    $region2: #{tpu_custom_call.1} parent=1 // pred_check
      _
    $region3: #{tpu_custom_call.1} parent=1 // pred_check_branch
      %18 = sbr.rel (0) target = $region5
    $region4: #{tpu_custom_call.1} parent=1 // pred_region
      %s20 = ssub.s32 256, 256
      %21 = vsyncadd [#allocation3], %s20
      %s22 = sshll.u32 [#allocation2], 4
      %s23 = int_to_ptr.vmem [resolvable:$true] %s22
      %28 = dma.hbm_to_vmem [thread:$0]  %s0, 256, %s23, [#allocation3], 128, 128, 8
    $region5: #{tpu_custom_call.1} parent=1 // pred_fallthru
      _
    // Predicated region
    $region6: #{tpu_custom_call.1} parent=1 // pred_check
      _
    $region7: #{tpu_custom_call.1} parent=1 // pred_check_branch
      %30 = sbr.rel (0) target = $region9
    $region8: #{tpu_custom_call.1} parent=1 // pred_region
      %s32 = ssub.s32 512, 512
      %33 = vsyncadd [#allocation6], %s32
      %s34 = sshll.u32 [#allocation5], 4
      %s35 = int_to_ptr.vmem [resolvable:$true] %s34
      %40 = dma.hbm_to_vmem [thread:$0]  %s1, 512, %s35, [#allocation6], 128, 128, 8
    $region9: #{tpu_custom_call.1} parent=1 // pred_fallthru
      _
    // Predicated region
    $region10: #{tpu_custom_call.1} parent=1 // pred_check
      _
    $region11: #{tpu_custom_call.1} parent=1 // pred_check_branch
      %42 = sbr.rel (0) target = $region13
    $region12: #{tpu_custom_call.1} parent=1 // pred_region
      _
    $region13: #{tpu_custom_call.1} parent=1 // pred_fallthru
      _
    // Predicated region
    $region14: #{tpu_custom_call.1} parent=1 // pred_check
      _
    $region15: #{tpu_custom_call.1} parent=1 // pred_check_branch
      %44 = sbr.rel (0) target = $region17
    $region16: #{tpu_custom_call.1} parent=1 // pred_region
      %s46 = ssub.s32 2048, 2048
      %47 = vsyncadd [#allocation6], %s46
      %s48 = sshll.u32 [#allocation7], 4
      %s49 = int_to_ptr.vmem [resolvable:$true] %s48
      %54 = dma.hbm_to_vmem [thread:$0]  %s3, 2048, %s49, [#allocation6], 128, 128, 8
    $region17: #{tpu_custom_call.1} parent=1 // pred_fallthru
      _
    // Predicated region
    $region18: #{tpu_custom_call.1} parent=1 // pred_check
      _
    $region19: #{tpu_custom_call.1} parent=1 // pred_check_branch
      %56 = sbr.rel (0) target = $region21
    $region20: #{tpu_custom_call.1} parent=1 // pred_region
      _
    $region21: #{tpu_custom_call.1} parent=1 // pred_fallthru
      _
    // Predicated region
    $region22: #{tpu_custom_call.1} parent=1 // pred_check
      _
    $region23: #{tpu_custom_call.1} parent=1 // pred_check_branch
      %58 = sbr.rel (0) target = $region25
    $region24: #{tpu_custom_call.1} parent=1 // pred_region
      %s60 = ssub.s32 2048, 2048
      %61 = vsyncadd [#allocation9], %s60
      %s62 = sshll.u32 [#allocation8], 4
      %s63 = int_to_ptr.vmem [resolvable:$true] %s62
      %68 = dma.hbm_to_vmem [thread:$0]  %s5, 2048, %s63, [#allocation9], 128, 128, 8
    $region25: #{tpu_custom_call.1} parent=1 // pred_fallthru
      _
    // Predicated region
    $region26: #{tpu_custom_call.1} parent=1 // pred_check
      _
    $region27: #{tpu_custom_call.1} parent=1 // pred_check_branch
      %70 = sbr.rel (0) target = $region29
    $region28: #{tpu_custom_call.1} parent=1 // pred_region
      _
    $region29: #{tpu_custom_call.1} parent=1 // pred_fallthru
      _
    // Predicated region
    $region30: #{tpu_custom_call.1} parent=1 // pred_check
      _
    $region31: #{tpu_custom_call.1} parent=1 // pred_check_branch
      %72 = sbr.rel (0) target = $region33
    $region32: #{tpu_custom_call.1} parent=1 // pred_region
      _
    $region33: #{tpu_custom_call.1} parent=1 // pred_fallthru
      _
    // Predicated region
    $region34: #{tpu_custom_call.1} parent=1 // pred_check
      _
    $region35: #{tpu_custom_call.1} parent=1 // pred_check_branch
      %74 = sbr.rel (0) target = $region37
    $region36: #{tpu_custom_call.1} parent=1 // pred_region
      %75 = dma.done [#allocation3], 256
    $region37: #{tpu_custom_call.1} parent=1 // pred_fallthru
      _
    // Predicated region
    $region38: #{tpu_custom_call.1} parent=1 // pred_check
      _
    $region39: #{tpu_custom_call.1} parent=1 // pred_check_branch
      %77 = sbr.rel (0) target = $region41
    $region40: #{tpu_custom_call.1} parent=1 // pred_region
      %78 = dma.done [#allocation6], 512
    $region41: #{tpu_custom_call.1} parent=1 // pred_fallthru
      _
    // Predicated region
    $region42: #{tpu_custom_call.1} parent=1 // pred_check
      _
    $region43: #{tpu_custom_call.1} parent=1 // pred_check_branch
      %80 = sbr.rel (0) target = $region45
    $region44: #{tpu_custom_call.1} parent=1 // pred_region
      %81 = dma.done [#allocation6], 2048
    $region45: #{tpu_custom_call.1} parent=1 // pred_fallthru
      _
    // Predicated region
    $region46: #{tpu_custom_call.1} parent=1 // pred_check
      _
    $region47: #{tpu_custom_call.1} parent=1 // pred_check_branch
      %83 = sbr.rel (0) target = $region49
    $region48: #{tpu_custom_call.1} parent=1 // pred_region
      %84 = dma.done [#allocation9], 2048
    $region49: #{tpu_custom_call.1} parent=1 // pred_fallthru
      _
    %v85 = vld [vmem:[#allocation2] sm:$0xff]
    %v86 = vld [vmem:[#allocation2 + $0x8] sm:$0xff]
    %v87 = vld [vmem:[#allocation5] sm:$0xff]
    %v88 = vld [vmem:[#allocation5 + $0x8] sm:$0xff]
    %v89 = vld [vmem:[#allocation5 + $0x10] sm:$0xff]
    %v90 = vld [vmem:[#allocation5 + $0x18] sm:$0xff]
    %v91 = vld [vmem:[%s2] sm:$0x1]
    %v93 = vlaneseq
    %v94 = vshrl.u32 %v93, 7
    %v95 = vsub.s32 0, %v94
    %v96 = vrot.slane %v91, %v95
    %vm98 = vcmask 261120
    %v100 = vsel %vm98, %v85, 0
    %v103 = vsel %vm98, %v86, 0
    %105 = vmatprep.subr.mxu0 0.0
    %106 = vmatpush1.msra.mxu0 %v87
    %107 = vmatprep.subr.mxu0 0.0
    %108 = vmatpush1.msra.mxu0 %v88
    %109 = vmatprep.subr.mxu0 0.0
    %110 = vmatpush1.msra.mxu0 %v89
    %111 = vmatprep.subr.mxu0 0.0
    %112 = vmatpush1.msra.mxu0 %v90
    %113 = vmatprep.subr.mxu0 0.0
    %114 = vmatpush1.msra.mxu0 0.0
    %115 = vmatprep.subr.mxu0 0.0
    %116 = vmatpush1.msra.mxu0 0.0
    %117 = vmatprep.subr.mxu0 0.0
    %118 = vmatpush1.msra.mxu0 0.0
    %119 = vmatprep.subr.mxu0 0.0
    %120 = vmatpush1.msra.mxu0 0.0
    %121 = vmatprep.subr.mxu0 0.0
    %122 = vmatpush1.msra.mxu0 0.0
    %123 = vmatprep.subr.mxu0 0.0
    %124 = vmatpush1.msra.mxu0 0.0
    %125 = vmatprep.subr.mxu0 0.0
    %126 = vmatpush1.msra.mxu0 0.0
    %127 = vmatprep.subr.mxu0 0.0
    %128 = vmatpush1.msra.mxu0 0.0
    %129 = vmatprep.subr.mxu0 0.0
    %130 = vmatpush1.msra.mxu0 0.0
    %131 = vmatprep.subr.mxu0 0.0
    %132 = vmatpush1.msra.mxu0 0.0
    %133 = vmatprep.subr.mxu0 0.0
    %134 = vmatpush1.msra.mxu0 0.0
    %135 = vmatprep.subr.mxu0 0.0
    %136 = vmatpush1.msra.mxu0 0.0
    %137 = vmatprep.subr.mxu0 0.0
    %138 = vmatpush1.msra.mxu0 0.0
    %139 = vmatprep.subr.mxu0 0.0
    %140 = vmatpush1.msra.mxu0 0.0
    %141 = vmatprep.subr.mxu0 0.0
    %142 = vmatpush1.msra.mxu0 0.0
    %143 = vmatprep.subr.mxu0 0.0
    %144 = vmatpush1.msra.mxu0 0.0
    %145 = vmatprep.subr.mxu0 0.0
    %146 = vmatpush1.msra.mxu0 0.0
    %147 = vmatprep.subr.mxu0 0.0
    %148 = vmatpush1.msra.mxu0 0.0
    %149 = vmatprep.subr.mxu0 0.0
    %150 = vmatpush1.msra.mxu0 0.0
    %151 = vmatprep.subr.mxu0 0.0
    %152 = vmatpush1.msra.mxu0 0.0
    %153 = vmatprep.subr.mxu0 0.0
    %154 = vmatpush1.msra.mxu0 0.0
    %155 = vmatprep.subr.mxu0 0.0
    %156 = vmatpush1.msra.mxu0 0.0
    %157 = vmatprep.subr.mxu0 0.0
    %158 = vmatpush1.msra.mxu0 0.0
    %159 = vmatprep.subr.mxu0 0.0
    %160 = vmatpush1.msra.mxu0 0.0
    %161 = vmatprep.subr.mxu0 0.0
    %162 = vmatpush1.msra.mxu0 0.0
    %163 = vmatprep.subr.mxu0 0.0
    %164 = vmatpush1.msra.mxu0 0.0
    %165 = vmatprep.subr.mxu0 0.0
    %166 = vmatpush1.msra.mxu0 0.0
    %167 = vmatprep.subr.mxu0 0.0
    %168 = vmatpush1.msra.mxu0 0.0
    %169 = vmatprep.mubr.f32.mxu0 0.0
    %170 = vmatmul.mubr.f32.gmra.mrb[0].mxu0 %v100
    %v171 = vpop.f32.mrb[0].mxu0
    %v172 = vadd.f32 %v96, %v171
    %v173 = vpop.f32.mrb[0].mxu0
    %174 = vmatprep.mubr.f32.mxu0 0.0
    %175 = vmatmul.mubr.f32.gmra.mrb[0].mxu0 %v103
    %v176 = vpop.f32.mrb[0].mxu0
    %v177 = vadd.f32 %v96, %v176
    %v178 = vpop.f32.mrb[0].mxu0
    %179 = vdwg.mxu0
    %v180 = vmax.f32 %v172, 0.0
    %v181 = vmax.f32 %v177, 0.0
    %v182 = vld [vmem:[#allocation7] sm:$0xff]
    %v183 = vld [vmem:[#allocation7 + $0x8] sm:$0xff]
    %v184 = vld [vmem:[#allocation7 + $0x10] sm:$0xff]
    %v185 = vld [vmem:[#allocation7 + $0x18] sm:$0xff]
    %v186 = vld [vmem:[#allocation7 + $0x20] sm:$0xff]
    %v187 = vld [vmem:[#allocation7 + $0x28] sm:$0xff]
    %v188 = vld [vmem:[#allocation7 + $0x30] sm:$0xff]
    %v189 = vld [vmem:[#allocation7 + $0x38] sm:$0xff]
    %v190 = vld [vmem:[#allocation7 + $0x40] sm:$0xff]
    %v191 = vld [vmem:[#allocation7 + $0x48] sm:$0xff]
    %v192 = vld [vmem:[#allocation7 + $0x50] sm:$0xff]
    %v193 = vld [vmem:[#allocation7 + $0x58] sm:$0xff]
    %v194 = vld [vmem:[#allocation7 + $0x60] sm:$0xff]
    %v195 = vld [vmem:[#allocation7 + $0x68] sm:$0xff]
    %v196 = vld [vmem:[#allocation7 + $0x70] sm:$0xff]
    %v197 = vld [vmem:[#allocation7 + $0x78] sm:$0xff]
    %v198 = vld [vmem:[%s4] sm:$0x1]
    %v200 = vlaneseq
    %v201 = vshrl.u32 %v200, 7
    %v202 = vsub.s32 0, %v201
    %v203 = vrot.slane %v198, %v202
    %205 = vmatprep.subr.mxu0 0.0
    %206 = vmatpush1.msra.mxu0 %v182
    %207 = vmatprep.subr.mxu0 0.0
    %208 = vmatpush1.msra.mxu0 %v183
    %209 = vmatprep.subr.mxu0 0.0
    %210 = vmatpush1.msra.mxu0 %v184
    %211 = vmatprep.subr.mxu0 0.0
    %212 = vmatpush1.msra.mxu0 %v185
    %213 = vmatprep.subr.mxu0 0.0
    %214 = vmatpush1.msra.mxu0 %v186
    %215 = vmatprep.subr.mxu0 0.0
    %216 = vmatpush1.msra.mxu0 %v187
    %217 = vmatprep.subr.mxu0 0.0
    %218 = vmatpush1.msra.mxu0 %v188
    %219 = vmatprep.subr.mxu0 0.0
    %220 = vmatpush1.msra.mxu0 %v189
    %221 = vmatprep.subr.mxu0 0.0
    %222 = vmatpush1.msra.mxu0 %v190
    %223 = vmatprep.subr.mxu0 0.0
    %224 = vmatpush1.msra.mxu0 %v191
    %225 = vmatprep.subr.mxu0 0.0
    %226 = vmatpush1.msra.mxu0 %v192
    %227 = vmatprep.subr.mxu0 0.0
    %228 = vmatpush1.msra.mxu0 %v193
    %229 = vmatprep.subr.mxu0 0.0
    %230 = vmatpush1.msra.mxu0 %v194
    %231 = vmatprep.subr.mxu0 0.0
    %232 = vmatpush1.msra.mxu0 %v195
    %233 = vmatprep.subr.mxu0 0.0
    %234 = vmatpush1.msra.mxu0 %v196
    %235 = vmatprep.subr.mxu0 0.0
    %236 = vmatpush1.msra.mxu0 %v197
    %237 = vmatprep.subr.mxu0 0.0
    %238 = vmatpush1.msra.mxu0 0.0
    %239 = vmatprep.subr.mxu0 0.0
    %240 = vmatpush1.msra.mxu0 0.0
    %241 = vmatprep.subr.mxu0 0.0
    %242 = vmatpush1.msra.mxu0 0.0
    %243 = vmatprep.subr.mxu0 0.0
    %244 = vmatpush1.msra.mxu0 0.0
    %245 = vmatprep.subr.mxu0 0.0
    %246 = vmatpush1.msra.mxu0 0.0
    %247 = vmatprep.subr.mxu0 0.0
    %248 = vmatpush1.msra.mxu0 0.0
    %249 = vmatprep.subr.mxu0 0.0
    %250 = vmatpush1.msra.mxu0 0.0
    %251 = vmatprep.subr.mxu0 0.0
    %252 = vmatpush1.msra.mxu0 0.0
    %253 = vmatprep.subr.mxu0 0.0
    %254 = vmatpush1.msra.mxu0 0.0
    %255 = vmatprep.subr.mxu0 0.0
    %256 = vmatpush1.msra.mxu0 0.0
    %257 = vmatprep.subr.mxu0 0.0
    %258 = vmatpush1.msra.mxu0 0.0
    %259 = vmatprep.subr.mxu0 0.0
    %260 = vmatpush1.msra.mxu0 0.0
    %261 = vmatprep.subr.mxu0 0.0
    %262 = vmatpush1.msra.mxu0 0.0
    %263 = vmatprep.subr.mxu0 0.0
    %264 = vmatpush1.msra.mxu0 0.0
    %265 = vmatprep.subr.mxu0 0.0
    %266 = vmatpush1.msra.mxu0 0.0
    %267 = vmatprep.subr.mxu0 0.0
    %268 = vmatpush1.msra.mxu0 0.0
    %269 = vmatprep.mubr.f32.mxu0 0.0
    %270 = vmatmul.mubr.f32.gmra.mrb[0].mxu0 %v180
    %v271 = vpop.f32.mrb[0].mxu0
    %v272 = vadd.f32 %v203, %v271
    %v273 = vpop.f32.mrb[0].mxu0
    %274 = vmatprep.mubr.f32.mxu0 0.0
    %275 = vmatmul.mubr.f32.gmra.mrb[0].mxu0 %v181
    %v276 = vpop.f32.mrb[0].mxu0
    %v277 = vadd.f32 %v203, %v276
    %v278 = vpop.f32.mrb[0].mxu0
    %279 = vdwg.mxu0
    %v280 = vmax.f32 %v272, 0.0
    %v281 = vmax.f32 %v277, 0.0
    %v282 = vld [vmem:[#allocation8] sm:$0xff]
    %v283 = vld [vmem:[#allocation8 + $0x8] sm:$0xff]
    %v284 = vld [vmem:[#allocation8 + $0x10] sm:$0xff]
    %v285 = vld [vmem:[#allocation8 + $0x18] sm:$0xff]
    %v286 = vld [vmem:[#allocation8 + $0x20] sm:$0xff]
    %v287 = vld [vmem:[#allocation8 + $0x28] sm:$0xff]
    %v288 = vld [vmem:[#allocation8 + $0x30] sm:$0xff]
    %v289 = vld [vmem:[#allocation8 + $0x38] sm:$0xff]
    %v290 = vld [vmem:[#allocation8 + $0x40] sm:$0xff]
    %v291 = vld [vmem:[#allocation8 + $0x48] sm:$0xff]
    %v292 = vld [vmem:[#allocation8 + $0x50] sm:$0xff]
    %v293 = vld [vmem:[#allocation8 + $0x58] sm:$0xff]
    %v294 = vld [vmem:[#allocation8 + $0x60] sm:$0xff]
    %v295 = vld [vmem:[#allocation8 + $0x68] sm:$0xff]
    %v296 = vld [vmem:[#allocation8 + $0x70] sm:$0xff]
    %v297 = vld [vmem:[#allocation8 + $0x78] sm:$0xff]
    %v298 = vld [vmem:[%s7] sm:$0x1]
    %v300 = vlaneseq
    %v301 = vshrl.u32 %v300, 7
    %v302 = vsub.s32 0, %v301
    %v303 = vrot.slane %v298, %v302
    %305 = vmatprep.subr.mxu0 0.0
    %306 = vmatpush1.msra.mxu0 %v282
    %307 = vmatprep.subr.mxu0 0.0
    %308 = vmatpush1.msra.mxu0 %v283
    %309 = vmatprep.subr.mxu0 0.0
    %310 = vmatpush1.msra.mxu0 %v284
    %311 = vmatprep.subr.mxu0 0.0
    %312 = vmatpush1.msra.mxu0 %v285
    %313 = vmatprep.subr.mxu0 0.0
    %314 = vmatpush1.msra.mxu0 %v286
    %315 = vmatprep.subr.mxu0 0.0
    %316 = vmatpush1.msra.mxu0 %v287
    %317 = vmatprep.subr.mxu0 0.0
    %318 = vmatpush1.msra.mxu0 %v288
    %319 = vmatprep.subr.mxu0 0.0
    %320 = vmatpush1.msra.mxu0 %v289
    %321 = vmatprep.subr.mxu0 0.0
    %322 = vmatpush1.msra.mxu0 %v290
    %323 = vmatprep.subr.mxu0 0.0
    %324 = vmatpush1.msra.mxu0 %v291
    %325 = vmatprep.subr.mxu0 0.0
    %326 = vmatpush1.msra.mxu0 %v292
    %327 = vmatprep.subr.mxu0 0.0
    %328 = vmatpush1.msra.mxu0 %v293
    %329 = vmatprep.subr.mxu0 0.0
    %330 = vmatpush1.msra.mxu0 %v294
    %331 = vmatprep.subr.mxu0 0.0
    %332 = vmatpush1.msra.mxu0 %v295
    %333 = vmatprep.subr.mxu0 0.0
    %334 = vmatpush1.msra.mxu0 %v296
    %335 = vmatprep.subr.mxu0 0.0
    %336 = vmatpush1.msra.mxu0 %v297
    %337 = vmatprep.subr.mxu0 0.0
    %338 = vmatpush1.msra.mxu0 0.0
    %339 = vmatprep.subr.mxu0 0.0
    %340 = vmatpush1.msra.mxu0 0.0
    %341 = vmatprep.subr.mxu0 0.0
    %342 = vmatpush1.msra.mxu0 0.0
    %343 = vmatprep.subr.mxu0 0.0
    %344 = vmatpush1.msra.mxu0 0.0
    %345 = vmatprep.subr.mxu0 0.0
    %346 = vmatpush1.msra.mxu0 0.0
    %347 = vmatprep.subr.mxu0 0.0
    %348 = vmatpush1.msra.mxu0 0.0
    %349 = vmatprep.subr.mxu0 0.0
    %350 = vmatpush1.msra.mxu0 0.0
    %351 = vmatprep.subr.mxu0 0.0
    %352 = vmatpush1.msra.mxu0 0.0
    %353 = vmatprep.subr.mxu0 0.0
    %354 = vmatpush1.msra.mxu0 0.0
    %355 = vmatprep.subr.mxu0 0.0
    %356 = vmatpush1.msra.mxu0 0.0
    %357 = vmatprep.subr.mxu0 0.0
    %358 = vmatpush1.msra.mxu0 0.0
    %359 = vmatprep.subr.mxu0 0.0
    %360 = vmatpush1.msra.mxu0 0.0
    %361 = vmatprep.subr.mxu0 0.0
    %362 = vmatpush1.msra.mxu0 0.0
    %363 = vmatprep.subr.mxu0 0.0
    %364 = vmatpush1.msra.mxu0 0.0
    %365 = vmatprep.subr.mxu0 0.0
    %366 = vmatpush1.msra.mxu0 0.0
    %367 = vmatprep.subr.mxu0 0.0
    %368 = vmatpush1.msra.mxu0 0.0
    %369 = vmatprep.mubr.f32.mxu0 0.0
    %370 = vmatmul.mubr.f32.gmra.mrb[0].mxu0 %v280
    %v371 = vpop.f32.mrb[0].mxu0
    %v372 = vadd.f32 %v303, %v371
    %v373 = vpop.f32.mrb[0].mxu0
    %374 = vmatprep.mubr.f32.mxu0 0.0
    %375 = vmatmul.mubr.f32.gmra.mrb[0].mxu0 %v281
    %v376 = vpop.f32.mrb[0].mxu0
    %v377 = vadd.f32 %v303, %v376
    %v378 = vpop.f32.mrb[0].mxu0
    %379 = vdwg.mxu0
    %v380 = vld [vmem:[%s6] sm:$0x1]
    %v382 = vlaneseq
    %v383 = vshrl.u32 %v382, 7
    %v384 = vsub.s32 0, %v383
    %v385 = vrot.slane %v380, %v384
    %v387 = vmul.f32 %v180, %v385
    %v388 = vmul.f32 %v181, %v385
    %389 = vadd.xlane.f32.xlu0 %v387
    %v390 = vpop.xlane.xlu0 %389
    %391 = vadd.xlane.f32.xlu0 %v388
    %v392 = vpop.xlane.xlu0 %391
    %v393 = vlaneseq
    %v394 = vand.u32 %v393, 127
    %vm395 = vcmp.eq.s32.totalorder %v394, 8
    %v396 = vsel %vm395, %v390, 0.0
    %v397 = vsel %vm395, %v392, 0.0
    %v398 = vadd.f32 %v372, %v396
    %v399 = vadd.f32 %v377, %v397
    %400 = vst [vmem:[#allocation10] sm:$0xff] %v398
    %401 = vst [vmem:[#allocation10 + $0x8] sm:$0xff] %v399
    // Predicated region
    $region50: #{tpu_custom_call.1} parent=1 // pred_check
      _
    $region51: #{tpu_custom_call.1} parent=1 // pred_check_branch
      %403 = sbr.rel (0) target = $region53
    $region52: #{tpu_custom_call.1} parent=1 // pred_region
      %s405 = ssub.s32 256, 256
      %406 = vsyncadd [#allocation4], %s405
      %s407 = sshll.u32 [#allocation10], 4
      %s408 = int_to_ptr.vmem [resolvable:$true] %s407
      %413 = dma.vmem_to_hbm [thread:$0]  %s408, 256, %s8, [#allocation4], 128, 128, 8
    $region53: #{tpu_custom_call.1} parent=1 // pred_fallthru
      _
    // Predicated region
    $region54: #{tpu_custom_call.1} parent=1 // pred_check
      _
    $region55: #{tpu_custom_call.1} parent=1 // pred_check_branch
      %415 = sbr.rel (0) target = $region57
    $region56: #{tpu_custom_call.1} parent=1 // pred_region
      %416 = dma.done [#allocation4], 256
    $region57: #{tpu_custom_call.1} parent=1 // pred_fallthru
      _
    %417 = vsyncpa [#allocation3], 1
    %418 = vsyncpa [#allocation6], 1
    %419 = vsyncpa [#allocation9], 1
    %420 = vsyncpa [#allocation4], 1

</llo_original>
